<compile_context>
chip_gen: v7x
topology: tpu7x:2x2x1
jax: 0.10.0
libtpu: 0.0.40
codegen_flags: <defaults>
</compile_context>

<pallas_src>
import functools

import jax
import jax.numpy as jnp
from jax import lax
from jax.experimental import pallas as pl
from jax.experimental.pallas import tpu as pltpu
import numpy as np


def _round_up(x, m):
    return ((x + m - 1) // m) * m


def _pick_batch_tile(B, T, H, target_bytes=2 << 20):
    """Batch rows per grid step: ~target_bytes of `inputs` per tile, sublane-legal."""
    row_bytes = T * H * 4
    tb = max(1, target_bytes // max(row_bytes, 1))
    if tb >= B:
        return B
    # (TB, 1) lengths / (TB, P) output blocks need TB % 8 == 0 unless TB == B.
    tb = max(8, (tb // 8) * 8)
    return min(tb, B)


def _pad_lanes(x2d, padded_cols):
    """Zero-pad the last (lane) dim of a 2-D value to `padded_cols`.

    Implemented as a tiny matmul against an identity embedding (iota == iota),
    which always lowers cleanly, so the subsequent store is a full-width
    unmasked `vst` instead of a masked partial store.  No-op when already
    lane-aligned (production sizes: T, H multiples of 128)."""
    rows, cols = x2d.shape
    if cols == padded_cols:
        return x2d
    proj = (lax.broadcasted_iota(jnp.int32, (cols, padded_cols), 0)
            == lax.broadcasted_iota(jnp.int32, (cols, padded_cols), 1)
            ).astype(jnp.float32)
    return jnp.dot(x2d, proj, preferred_element_type=jnp.float32)


def _attention_kernel(x_ref, v_ref, len_ref, *out_refs, want_attention):
    rep_ref = out_refs[0]
    att_ref = out_refs[1] if want_attention else None

    x = x_ref[...]                                   # (TB, T, H) f32
    v = v_ref[...]                                   # (1, H)     f32
    lens = len_ref[...]                              # (TB, 1)    int32
    TB, T, H = x.shape

    # logits[b, t] = <x[b, t, :], v>  -- VPU multiply + XLU lane reduction.
    logits = jnp.sum(x * v[jnp.newaxis, :, :], axis=-1)           # (TB, T)

    # Per-row max: the subtracted constant cancels in masked/att_sums, so the
    # normalized outputs are unchanged, but each batch tile is independent.
    m = jnp.max(logits, axis=1, keepdims=True)                    # (TB, 1)
    unnorm_ai = jnp.exp(logits - m)                               # (TB, T)

    # mask[b, t] = (t < input_lengths[b])
    idx = lax.broadcasted_iota(jnp.int32, (TB, T), 1)
    mask = (idx < lens).astype(jnp.float32)

    masked = unnorm_ai * mask
    att_sums = jnp.sum(masked, axis=1, keepdims=True)             # (TB, 1)
    # TODO(synk): zero-length rows give 0/0 -> NaN, matching the PyTorch original.
    attentions = masked * pl.reciprocal(att_sums, approx=True)    # (TB, T)

    # representations[b, h] = sum_t attentions[b, t] * x[b, t, h]
    # Kept on the VPU/XLU (tile-sized temp); batched 2-Dx3-D dot_general
    # lowering is not guaranteed in Mosaic and MXU util would be poor anyway.
    representations = jnp.sum(x * attentions[:, :, None], axis=1)  # (TB, H)

    # Lane-dense, full-width stores (outputs padded to a multiple of 128).
    rep_ref[...] = _pad_lanes(representations, rep_ref.shape[-1])
    if want_attention:
        att_ref[...] = _pad_lanes(attentions, att_ref.shape[-1])


@functools.partial(jax.jit, static_argnames=("return_attention",))
def attention_forward(inputs, input_lengths, attention_vector,
                      return_attention=False):
    """inputs: (B, T, H) f32; input_lengths: (B,) int; attention_vector: (H,) f32."""
    B, T, H = inputs.shape
    TB = _pick_batch_tile(B, T, H)
    TP = _round_up(T, 128)           # lane-dense attentions output
    HP = _round_up(H, 128)           # lane-dense representations output
    grid = (pl.cdiv(B, TB),)

    x = inputs.astype(jnp.float32)
    v2d = attention_vector.astype(jnp.float32).reshape(1, H)
    lens2d = input_lengths.astype(jnp.int32).reshape(B, 1)

    # VMEM budget: double-buffered x tile + double-buffered outputs + in-kernel
    # temporaries, kept well under the v7x 64 MiB physical VMEM.
    x_tile = TB * T * H * 4
    out_tile = TB * (HP + (TP if return_attention else 0)) * 4
    vmem_bytes = 2 * (x_tile + out_tile) + 2 * x_tile + (4 << 20)
    vmem_bytes = int(min(max(vmem_bytes, 16 << 20), 40 << 20))

    if return_attention:
        out_shape = (jax.ShapeDtypeStruct((B, HP), jnp.float32),
                     jax.ShapeDtypeStruct((B, TP), jnp.float32))
        out_specs = (pl.BlockSpec((TB, HP), lambda i: (i, 0)),
                     pl.BlockSpec((TB, TP), lambda i: (i, 0)))
    else:
        out_shape = jax.ShapeDtypeStruct((B, HP), jnp.float32)
        out_specs = pl.BlockSpec((TB, HP), lambda i: (i, 0))

    kernel = functools.partial(_attention_kernel,
                               want_attention=return_attention)

    outs = pl.pallas_call(
        kernel,
        out_shape=out_shape,
        grid_spec=pltpu.PrefetchScalarGridSpec(
            num_scalar_prefetch=0,
            grid=grid,
            in_specs=[
                pl.BlockSpec((TB, T, H), lambda i: (i, 0, 0)),   # inputs tile
                pl.BlockSpec((1, H), lambda i: (0, 0)),          # attention vector
                pl.BlockSpec((TB, 1), lambda i: (i, 0)),         # lengths tile
            ],
            out_specs=out_specs,
        ),
        compiler_params=pltpu.CompilerParams(
            dimension_semantics=("parallel",),   # batch tiles -> both TCs
            vmem_limit_bytes=vmem_bytes,
        ),
    )(x, v2d, lens2d)

    if return_attention:
        rep_p, att_p = outs
        return rep_p[:, :H], att_p[:, :T]
    return outs[:, :H], None


def attention_reference(inputs, input_lengths, attention_vector):
    """Pure-JAX reference mirroring the PyTorch forward, for correctness check."""
    logits = inputs @ attention_vector
    unnorm_ai = jnp.exp(logits - logits.max())
    T = inputs.shape[1]
    idxes = jnp.arange(T)[None, :]
    mask = (idxes < input_lengths[:, None]).astype(jnp.float32)
    masked = unnorm_ai * mask
    att_sums = masked.sum(axis=1, keepdims=True)
    attentions = masked / att_sums
    weighted = inputs * attentions[:, :, None]
    return weighted.sum(axis=1), attentions


if __name__ == "__main__":
    B, T, H = 2, 8, 32          # batch, timesteps, attention_size
    key = jax.random.PRNGKey(0)
    k_x, k_v = jax.random.split(key)

    inputs = jax.random.normal(k_x, (B, T, H), dtype=jnp.float32)
    # Parameter init matching: attention_vector.data.normal_(std=0.05)
    attention_vector = 0.05 * jax.random.normal(k_v, (H,), dtype=jnp.float32)
    input_lengths = jnp.array([8, 5], dtype=jnp.int32)

    rep, att = attention_forward(inputs, input_lengths, attention_vector,
                                 return_attention=True)
    rep = jax.block_until_ready(rep)
    att = jax.block_until_ready(att)

    rep_ref, att_ref = attention_reference(inputs, input_lengths, attention_vector)
    # Tolerance covers the (exact-after-normalization) per-row-max rearrangement
    # and the EUP approximate reciprocal used for the normalizer.
    assert np.allclose(np.asarray(rep), np.asarray(rep_ref), rtol=2e-3, atol=2e-3)
    assert np.allclose(np.asarray(att), np.asarray(att_ref), rtol=2e-3, atol=2e-3)

    # return_attention=False path (no attentions output materialized).
    rep2, none_att = attention_forward(inputs, input_lengths, attention_vector,
                                       return_attention=False)
    rep2 = jax.block_until_ready(rep2)
    assert none_att is None
    assert np.allclose(np.asarray(rep2), np.asarray(rep_ref), rtol=2e-3, atol=2e-3)

    print("KERNEL_OK")
</pallas_src>

<mosaic_0001>
module attributes {stable_mosaic.version = 11 : i64} {
  func.func @_attention_kernel(%arg0: i32, %arg1: memref<2x8x32xf32, #tpu.memory_space<vmem>>, %arg2: memref<1x32xf32, #tpu.memory_space<vmem>>, %arg3: memref<2x1xi32, #tpu.memory_space<vmem>>, %arg4: memref<2x128xf32, #tpu.memory_space<vmem>>, %arg5: memref<2x128xf32, #tpu.memory_space<vmem>>) attributes {dimension_semantics = [#tpu.dimension_semantics<parallel>], iteration_bounds = array<i64: 1>, scalar_prefetch = 0 : i64, scratch_operands = 0 : i64, tpu.core_type = #tpu.core_type<tc>, window_params = [{transform_indices = @transform_0, window_bounds = array<i64: 2, 8, 32>}, {pipeline_mode = #tpu.pipeline_mode<synchronous>, transform_indices = @transform_1, window_bounds = array<i64: 1, 32>}, {transform_indices = @transform_2, window_bounds = array<i64: 2, 1>}, {transform_indices = @transform_3, window_bounds = array<i64: 2, 128>}, {transform_indices = @transform_4, window_bounds = array<i64: 2, 128>}]} {
    %c0 = arith.constant 0 : index
    %c0_0 = arith.constant 0 : index
    %c0_1 = arith.constant 0 : index
    %0 = vector.load %arg1[%c0, %c0_0, %c0_1] : memref<2x8x32xf32, #tpu.memory_space<vmem>>, vector<2x8x32xf32>
    %c0_2 = arith.constant 0 : index
    %c0_3 = arith.constant 0 : index
    %1 = vector.load %arg2[%c0_2, %c0_3] : memref<1x32xf32, #tpu.memory_space<vmem>>, vector<1x32xf32>
    %c0_4 = arith.constant 0 : index
    %c0_5 = arith.constant 0 : index
    %2 = vector.load %arg3[%c0_4, %c0_5] : memref<2x1xi32, #tpu.memory_space<vmem>>, vector<2x1xi32>
    %3 = vector.shape_cast %1 : vector<1x32xf32> to vector<1x1x32xf32>
    %4 = vector.broadcast %3 : vector<1x1x32xf32> to vector<2x8x32xf32>
    %5 = arith.mulf %0, %4 : vector<2x8x32xf32>
    %cst = arith.constant dense<0.000000e+00> : vector<2x8xf32>
    %6 = vector.multi_reduction <add>, %5, %cst [2] : vector<2x8x32xf32> to vector<2x8xf32>
    %cst_6 = arith.constant dense<0xFF800000> : vector<2xf32>
    %7 = vector.multi_reduction <maximumf>, %6, %cst_6 [1] : vector<2x8xf32> to vector<2xf32>
    %8 = vector.shape_cast %7 : vector<2xf32> to vector<2x1xf32>
    %9 = vector.broadcast %8 : vector<2x1xf32> to vector<2x8xf32>
    %10 = arith.subf %6, %9 : vector<2x8xf32>
    %11 = math.exp %10 : vector<2x8xf32>
    %12 = tpu.iota {dimensions = array<i32: 1>} : vector<2x8xi32>
    %13 = vector.broadcast %2 : vector<2x1xi32> to vector<2x8xi32>
    %14 = arith.cmpi slt, %12, %13 : vector<2x8xi32>
    %15 = arith.extui %14 : vector<2x8xi1> to vector<2x8xi32>
    %16 = arith.sitofp %15 : vector<2x8xi32> to vector<2x8xf32>
    %17 = arith.mulf %11, %16 : vector<2x8xf32>
    %cst_7 = arith.constant dense<0.000000e+00> : vector<2xf32>
    %18 = vector.multi_reduction <add>, %17, %cst_7 [1] : vector<2x8xf32> to vector<2xf32>
    %19 = vector.shape_cast %18 : vector<2xf32> to vector<2x1xf32>
    %20 = tpu.reciprocal %19 {approx = true} : vector<2x1xf32> -> vector<2x1xf32>
    %21 = vector.broadcast %20 : vector<2x1xf32> to vector<2x8xf32>
    %22 = arith.mulf %17, %21 : vector<2x8xf32>
    %23 = vector.shape_cast %22 : vector<2x8xf32> to vector<2x8x1xf32>
    %24 = vector.broadcast %23 : vector<2x8x1xf32> to vector<2x8x32xf32>
    %25 = arith.mulf %0, %24 : vector<2x8x32xf32>
    %cst_8 = arith.constant dense<0.000000e+00> : vector<2x32xf32>
    %26 = vector.multi_reduction <add>, %25, %cst_8 [1] : vector<2x8x32xf32> to vector<2x32xf32>
    %27 = tpu.iota {dimensions = array<i32: 0>} : vector<32x128xi32>
    %28 = tpu.iota {dimensions = array<i32: 1>} : vector<32x128xi32>
    %29 = arith.cmpi eq, %27, %28 : vector<32x128xi32>
    %30 = arith.extui %29 : vector<32x128xi1> to vector<32x128xi32>
    %31 = arith.sitofp %30 : vector<32x128xi32> to vector<32x128xf32>
    %cst_9 = arith.constant dense<0.000000e+00> : vector<2x128xf32>
    %32 = tpu.matmul %26, %31, %cst_9 {dimension_numbers = #tpu.dot_dimension_numbers<[1], [0], [0], [1], [0, 0, 1, 1], [], []>} : vector<2x32xf32>, vector<32x128xf32>, vector<2x128xf32> -> vector<2x128xf32>
    %c0_10 = arith.constant 0 : index
    %c0_11 = arith.constant 0 : index
    %33 = vector.load %arg4[%c0_10, %c0_11] : memref<2x128xf32, #tpu.memory_space<vmem>>, vector<2x128xf32>
    tpu.vector_store %arg4[%c0_10, %c0_11], %32 {strides = array<i32>} : memref<2x128xf32, #tpu.memory_space<vmem>>, vector<2x128xf32>,
    %34 = tpu.iota {dimensions = array<i32: 0>} : vector<8x128xi32>
    %35 = tpu.iota {dimensions = array<i32: 1>} : vector<8x128xi32>
    %36 = arith.cmpi eq, %34, %35 : vector<8x128xi32>
    %37 = arith.extui %36 : vector<8x128xi1> to vector<8x128xi32>
    %38 = arith.sitofp %37 : vector<8x128xi32> to vector<8x128xf32>
    %cst_12 = arith.constant dense<0.000000e+00> : vector<2x128xf32>
    %39 = tpu.matmul %22, %38, %cst_12 {dimension_numbers = #tpu.dot_dimension_numbers<[1], [0], [0], [1], [0, 0, 1, 1], [], []>} : vector<2x8xf32>, vector<8x128xf32>, vector<2x128xf32> -> vector<2x128xf32>
    %c0_13 = arith.constant 0 : index
    %c0_14 = arith.constant 0 : index
    %40 = vector.load %arg5[%c0_13, %c0_14] : memref<2x128xf32, #tpu.memory_space<vmem>>, vector<2x128xf32>
    tpu.vector_store %arg5[%c0_13, %c0_14], %39 {strides = array<i32>} : memref<2x128xf32, #tpu.memory_space<vmem>>, vector<2x128xf32>,
    return
  }
  func.func @transform_0(%arg0: i32) -> (i32, i32, i32) {
    %c0_i32 = arith.constant 0 : i32
    %c0_i32_0 = arith.constant 0 : i32
    %c0_i32_1 = arith.constant 0 : i32
    return %arg0, %c0_i32, %c0_i32_0 : i32, i32, i32
  }
  func.func @transform_1(%arg0: i32) -> (i32, i32) {
    %c0_i32 = arith.constant 0 : i32
    %c0_i32_0 = arith.constant 0 : i32
    %c0_i32_1 = arith.constant 0 : i32
    return %c0_i32, %c0_i32_0 : i32, i32
  }
  func.func @transform_2(%arg0: i32) -> (i32, i32) {
    %c0_i32 = arith.constant 0 : i32
    %c0_i32_0 = arith.constant 0 : i32
    return %arg0, %c0_i32 : i32, i32
  }
  func.func @transform_3(%arg0: i32) -> (i32, i32) {
    %c0_i32 = arith.constant 0 : i32
    %c0_i32_0 = arith.constant 0 : i32
    return %arg0, %c0_i32 : i32, i32
  }
  func.func @transform_4(%arg0: i32) -> (i32, i32) {
    %c0_i32 = arith.constant 0 : i32
    %c0_i32_0 = arith.constant 0 : i32
    return %arg0, %c0_i32 : i32, i32
  }
}

</mosaic_0001>

<llo_original>
// kernel: attention_forward.1
$region0: #{attention_forward.1}
  #allocation0 [shape = 'u32[]', space=smem, size = 0x4, offset = 0x4, fixed_abs, tag = 'smem constant byte address 0x4 - core index']
  #allocation1 [shape = 'u32[144,128]{1,0:T(1,128)}', space=vmem, size = 0x12000, scoped, tag = 'internal scratch']
  %s0 = inlined_call_operand.hbm [shape: f32[2,8,32], index: 0, kind: input, shape index: {}]
  %s1 = inlined_call_operand.vmem [shape: f32[1,32], index: 1, kind: input, shape index: {}]
  %s2 = inlined_call_operand.vmem [shape: s32[2,1], index: 2, kind: input, shape index: {}]
  %s3 = inlined_call_operand.hbm [shape: f32[2,128], index: 3, kind: output, shape index: {0}]
  %s4 = inlined_call_operand.hbm [shape: f32[2,128], index: 4, kind: output, shape index: {1}]
  %5 = xla_tuple %s3, %s4
  %s6 = sld [smem:[#allocation0]]
  $region34: #{attention_forward.1} parent=0
    _
  %s8 = ssub.s32 1, %s6
  %s9 = scalar_select 0, %s8, %s6
  $region1: #{attention_forward.1} parent=0
    #allocation2 [shape = 'u8[8192]{0}', space=vmem, size = 0x2000, scoped, tag = 'input window, operand 0, single buffered']
    #allocation3 [shape = 's32[1]{0}', space=sflag, size = 0x4, scoped, tag = 'scoped memory for attention_forward.1']
    #allocation4 [shape = 's32[1]{0}', space=sflag, size = 0x4, scoped, tag = 'scoped memory for attention_forward.1']
    #allocation5 [shape = 'u8[1024]{0}', space=vmem, size = 0x400, scoped, tag = 'output window, operand 0, single buffered']
    #allocation6 [shape = 'u8[1024]{0}', space=vmem, size = 0x400, scoped, tag = 'output window, operand 1, single buffered']
    #allocation7 [shape = 's32[1]{0}', space=sflag, size = 0x4, scoped, tag = 'scoped memory for attention_forward.1']
    %10 = vsyncpa [#allocation3], 0
    %11 = vsyncpa [#allocation4], 0
    %12 = vsyncpa [#allocation7], 0
    // Predicated region
    $region2: #{attention_forward.1} parent=1 // pred_check
      _
    $region3: #{attention_forward.1} parent=1 // pred_check_branch
      %14 = sbr.rel (0) target = $region5
    $region4: #{attention_forward.1} parent=1 // pred_region
      %s16 = ssub.s32 256, 256
      %17 = vsyncadd [#allocation3], %s16
      %s18 = sshll.u32 [#allocation2], 4
      %s19 = int_to_ptr.vmem [resolvable:$true] %s18
      %24 = dma.hbm_to_vmem [thread:$0]  %s0, 256, %s19, [#allocation3], 128, 128, 8
    $region5: #{attention_forward.1} parent=1 // pred_fallthru
      _
    // Predicated region
    $region6: #{attention_forward.1} parent=1 // pred_check
      _
    $region7: #{attention_forward.1} parent=1 // pred_check_branch
      %26 = sbr.rel (0) target = $region9
    $region8: #{attention_forward.1} parent=1 // pred_region
      _
    $region9: #{attention_forward.1} parent=1 // pred_fallthru
      _
    // Predicated region
    $region10: #{attention_forward.1} parent=1 // pred_check
      _
    $region11: #{attention_forward.1} parent=1 // pred_check_branch
      %28 = sbr.rel (0) target = $region13
    $region12: #{attention_forward.1} parent=1 // pred_region
      _
    $region13: #{attention_forward.1} parent=1 // pred_fallthru
      _
    // Predicated region
    $region14: #{attention_forward.1} parent=1 // pred_check
      _
    $region15: #{attention_forward.1} parent=1 // pred_check_branch
      %30 = sbr.rel (0) target = $region17
    $region16: #{attention_forward.1} parent=1 // pred_region
      %31 = dma.done [#allocation3], 256
    $region17: #{attention_forward.1} parent=1 // pred_fallthru
      _
    %v32 = vld [vmem:[#allocation2] sm:$0xff]
    %v33 = vld [vmem:[#allocation2 + $0x8] sm:$0xff]
    %v34 = vld [vmem:[%s1] sm:$0x1]
    %v35 = vld [vmem:[%s2] sm:$0x3]
    %v37 = vlaneseq
    %v38 = vshrl.u32 %v37, 7
    %v39 = vsub.s32 0, %v38
    %v40 = vrot.slane %v34, %v39
    %v42 = vmul.f32 %v32, %v40
    %v43 = vmul.f32 %v33, %v40
    %vm44 = vcmask 261120
    %v45 = vsel %vm44, %v42, 0.0
    %46 = vadd.xlane.f32.xlu0 %v45
    %v47 = vpop.xlane.xlu0 %46
    %v48 = vsel %vm44, %v43, 0.0
    %49 = vadd.xlane.f32.xlu0 %v48
    %v50 = vpop.xlane.xlu0 %49
    %v53 = vlaneseq
    %v54 = vand.u32 %v53, 127
    %v55 = vlaneseq
    %v56 = vshrl.u32 %v55, 7
    %v57 = vsub.s32 %v54, %v56
    %v58 = vrot.slane %v47, %v57
    %v59 = vlaneseq
    %v60 = vshrl.u32 %v59, 7
    %v61 = vsub.s32 %v54, %v60
    %v62 = vrot.slane %v50, %v61
    %vm63 = vcmask 1041409
    %v64 = vsel %vm63, %v62, %v58
    %vm66 = vcmask 58368
    %v67 = vsel %vm66, %v64, -inf
    %68 = vmax.xlane.f32.xlu0 %v67
    %v69 = vpop.xlane.xlu0 %68
    %v71 = vlaneseq
    %v72 = vshrl.u32 %v71, 7
    %v73 = vsub.s32 0, %v72
    %v74 = vrot.slane %v69, %v73
    %v75 = vlaneseq
    %v76 = vshrl.u32 %v75, 7
    %v77 = vsub.s32 1, %v76
    %v78 = vrot.slane %v69, %v77
    %v81 = vsub.f32 %v47, %v74
    %v82 = vsub.f32 %v50, %v78
    %v83 = vmul.f32 %v81, 1.442695
    %v84 = vpow.pop %v83
    %v85 = vmul.f32 %v82, 1.442695
    %v86 = vpow.pop %v85
    %87 = vset.pattern.permute.xlu0 0
    %88 = vperm.xlu0 %87, %v35
    %v89 = vpop.permute.xlu0 %88
    %vm90 = vcmp.lt.s32.totalorder %v54, %v89
    %v91 = vsel %vm90, 1, 0
    %v92 = vcvt.s32.f32 %v91
    %v94 = vlaneseq
    %v95 = vshrl.u32 %v94, 7
    %v96 = vsub.s32 0, %v95
    %v97 = vrot.slane %v92, %v96
    %99 = vbcast.lane.b32.xlu0 %v97, 256
    %v100 = vpop.permute.xlu0 %99
    %v101 = vlaneseq
    %v102 = vshrl.u32 %v101, 7
    %v103 = vsub.s32 1, %v102
    %v104 = vrot.slane %v92, %v103
    %106 = vbcast.lane.b32.xlu0 %v104, 256
    %v107 = vpop.permute.xlu0 %106
    %v110 = vmul.f32 %v84, %v100
    %v111 = vmul.f32 %v86, %v107
    %114 = vset.pattern.permute.xlu0 0
    %115 = vperm.xlu0 %114, %v110
    %v116 = vpop.permute.xlu0 %115
    %117 = vset.pattern.permute.xlu0 0
    %118 = vperm.xlu0 %117, %v111
    %v119 = vpop.permute.xlu0 %118
    %v120 = vlaneseq
    %v121 = vshrl.u32 %v120, 7
    %v122 = vsub.s32 %v54, %v121
    %v123 = vrot.slane %v116, %v122
    %v124 = vlaneseq
    %v125 = vshrl.u32 %v124, 7
    %v126 = vsub.s32 %v54, %v125
    %v127 = vrot.slane %v119, %v126
    %v128 = vsel %vm63, %v127, %v123
    %v130 = vsel %vm66, %v128, 0.0
    %131 = vadd.xlane.f32.xlu0 %v130
    %v132 = vpop.xlane.xlu0 %131
    %v133 = vrcp.pop %v132
    %v135 = vlaneseq
    %v136 = vshrl.u32 %v135, 7
    %v137 = vsub.s32 0, %v136
    %v138 = vrot.slane %v133, %v137
    %v139 = vlaneseq
    %v140 = vshrl.u32 %v139, 7
    %v141 = vsub.s32 1, %v140
    %v142 = vrot.slane %v133, %v141
    %v145 = vmul.f32 %v110, %v138
    %v146 = vmul.f32 %v111, %v142
    %148 = vset.pattern.permute.xlu0 0
    %149 = vperm.xlu0 %148, %v145
    %v150 = vpop.permute.xlu0 %149
    %153 = vset.pattern.permute.xlu0 0
    %154 = vperm.xlu0 %153, %v146
    %v155 = vpop.permute.xlu0 %154
    %v157 = vmul.f32 %v32, %v150
    %v158 = vmul.f32 %v33, %v155
    %v159 = vsel %vm44, %v157, 0.0
    %v160 = vrot.slane %v159, 4
    %v161 = vadd.f32 %v159, %v160
    %v162 = vrot.slane %v161, 2
    %v163 = vadd.f32 %v161, %v162
    %v164 = vrot.slane %v163, 1
    %v165 = vadd.f32 %v163, %v164
    %v166 = vsel %vm44, %v158, 0.0
    %v167 = vrot.slane %v166, 4
    %v168 = vadd.f32 %v166, %v167
    %v169 = vrot.slane %v168, 2
    %v170 = vadd.f32 %v168, %v169
    %v171 = vrot.slane %v170, 1
    %v172 = vadd.f32 %v170, %v171
    %v173 = vlaneseq
    %v174 = vshrl.u32 %v173, 7
    %v175 = vadd.s32 %v174, 8
    %v176 = vadd.s32 %v174, 16
    %v177 = vadd.s32 %v174, 24
    %vm178 = vcmp.eq.s32.totalorder %v174, %v54
    %vm179 = vcmp.eq.s32.totalorder %v175, %v54
    %vm180 = vcmp.eq.s32.totalorder %v176, %v54
    %vm181 = vcmp.eq.s32.totalorder %v177, %v54
    %v182 = vsel %vm178, 1, 0
    %v183 = vsel %vm179, 1, 0
    %v184 = vsel %vm180, 1, 0
    %v185 = vsel %vm181, 1, 0
    %v186 = vcvt.s32.f32 %v182
    %v187 = vcvt.s32.f32 %v183
    %v188 = vcvt.s32.f32 %v184
    %v189 = vcvt.s32.f32 %v185
    %v192 = vsel %vm63, %v172, %v165
    %v193 = vsel %vm44, %v192, 0
    %195 = vmatprep.subr.mxu0 0.0
    %196 = vmatpush1.msra.mxu0 %v186
    %197 = vmatprep.subr.mxu0 0.0
    %198 = vmatpush1.msra.mxu0 %v187
    %199 = vmatprep.subr.mxu0 0.0
    %200 = vmatpush1.msra.mxu0 %v188
    %201 = vmatprep.subr.mxu0 0.0
    %202 = vmatpush1.msra.mxu0 %v189
    %203 = vmatprep.subr.mxu0 0.0
    %204 = vmatpush1.msra.mxu0 0.0
    %205 = vmatprep.subr.mxu0 0.0
    %206 = vmatpush1.msra.mxu0 0.0
    %207 = vmatprep.subr.mxu0 0.0
    %208 = vmatpush1.msra.mxu0 0.0
    %209 = vmatprep.subr.mxu0 0.0
    %210 = vmatpush1.msra.mxu0 0.0
    %211 = vmatprep.subr.mxu0 0.0
    %212 = vmatpush1.msra.mxu0 0.0
    %213 = vmatprep.subr.mxu0 0.0
    %214 = vmatpush1.msra.mxu0 0.0
    %215 = vmatprep.subr.mxu0 0.0
    %216 = vmatpush1.msra.mxu0 0.0
    %217 = vmatprep.subr.mxu0 0.0
    %218 = vmatpush1.msra.mxu0 0.0
    %219 = vmatprep.subr.mxu0 0.0
    %220 = vmatpush1.msra.mxu0 0.0
    %221 = vmatprep.subr.mxu0 0.0
    %222 = vmatpush1.msra.mxu0 0.0
    %223 = vmatprep.subr.mxu0 0.0
    %224 = vmatpush1.msra.mxu0 0.0
    %225 = vmatprep.subr.mxu0 0.0
    %226 = vmatpush1.msra.mxu0 0.0
    %227 = vmatprep.subr.mxu0 0.0
    %228 = vmatpush1.msra.mxu0 0.0
    %229 = vmatprep.subr.mxu0 0.0
    %230 = vmatpush1.msra.mxu0 0.0
    %231 = vmatprep.subr.mxu0 0.0
    %232 = vmatpush1.msra.mxu0 0.0
    %233 = vmatprep.subr.mxu0 0.0
    %234 = vmatpush1.msra.mxu0 0.0
    %235 = vmatprep.subr.mxu0 0.0
    %236 = vmatpush1.msra.mxu0 0.0
    %237 = vmatprep.subr.mxu0 0.0
    %238 = vmatpush1.msra.mxu0 0.0
    %239 = vmatprep.subr.mxu0 0.0
    %240 = vmatpush1.msra.mxu0 0.0
    %241 = vmatprep.subr.mxu0 0.0
    %242 = vmatpush1.msra.mxu0 0.0
    %243 = vmatprep.subr.mxu0 0.0
    %244 = vmatpush1.msra.mxu0 0.0
    %245 = vmatprep.subr.mxu0 0.0
    %246 = vmatpush1.msra.mxu0 0.0
    %247 = vmatprep.subr.mxu0 0.0
    %248 = vmatpush1.msra.mxu0 0.0
    %249 = vmatprep.subr.mxu0 0.0
    %250 = vmatpush1.msra.mxu0 0.0
    %251 = vmatprep.subr.mxu0 0.0
    %252 = vmatpush1.msra.mxu0 0.0
    %253 = vmatprep.subr.mxu0 0.0
    %254 = vmatpush1.msra.mxu0 0.0
    %255 = vmatprep.subr.mxu0 0.0
    %256 = vmatpush1.msra.mxu0 0.0
    %257 = vmatprep.subr.mxu0 0.0
    %258 = vmatpush1.msra.mxu0 0.0
    %259 = vmatprep.mubr.f32.mxu0 0.0
    %260 = vmatmul.mubr.f32.gmra.mrb[0].mxu0 %v193
    %v261 = vpop.f32.mrb[0].mxu0
    %v262 = vadd.f32 0.0, %v261
    %v263 = vpop.f32.mrb[0].mxu0
    %264 = vdwg.mxu0
    %265 = vst [vmem:[#allocation5] sm:$0x3] %v262
    %v266 = vlaneseq
    %v267 = vshrl.u32 %v266, 7
    %v268 = vsub.s32 %v54, %v267
    %v269 = vrot.slane %v150, %v268
    %v270 = vlaneseq
    %v271 = vshrl.u32 %v270, 7
    %v272 = vsub.s32 %v54, %v271
    %v273 = vrot.slane %v155, %v272
    %v274 = vsel %vm63, %v273, %v269
    %vm275 = vcmask 64512
    %v276 = vsel %vm275, %v274, 0
    %278 = vmatprep.subr.mxu0 0.0
    %279 = vmatpush1.msra.mxu0 %v186
    %280 = vmatprep.subr.mxu0 0.0
    %281 = vmatpush1.msra.mxu0 0.0
    %282 = vmatprep.subr.mxu0 0.0
    %283 = vmatpush1.msra.mxu0 0.0
    %284 = vmatprep.subr.mxu0 0.0
    %285 = vmatpush1.msra.mxu0 0.0
    %286 = vmatprep.subr.mxu0 0.0
    %287 = vmatpush1.msra.mxu0 0.0
    %288 = vmatprep.subr.mxu0 0.0
    %289 = vmatpush1.msra.mxu0 0.0
    %290 = vmatprep.subr.mxu0 0.0
    %291 = vmatpush1.msra.mxu0 0.0
    %292 = vmatprep.subr.mxu0 0.0
    %293 = vmatpush1.msra.mxu0 0.0
    %294 = vmatprep.subr.mxu0 0.0
    %295 = vmatpush1.msra.mxu0 0.0
    %296 = vmatprep.subr.mxu0 0.0
    %297 = vmatpush1.msra.mxu0 0.0
    %298 = vmatprep.subr.mxu0 0.0
    %299 = vmatpush1.msra.mxu0 0.0
    %300 = vmatprep.subr.mxu0 0.0
    %301 = vmatpush1.msra.mxu0 0.0
    %302 = vmatprep.subr.mxu0 0.0
    %303 = vmatpush1.msra.mxu0 0.0
    %304 = vmatprep.subr.mxu0 0.0
    %305 = vmatpush1.msra.mxu0 0.0
    %306 = vmatprep.subr.mxu0 0.0
    %307 = vmatpush1.msra.mxu0 0.0
    %308 = vmatprep.subr.mxu0 0.0
    %309 = vmatpush1.msra.mxu0 0.0
    %310 = vmatprep.subr.mxu0 0.0
    %311 = vmatpush1.msra.mxu0 0.0
    %312 = vmatprep.subr.mxu0 0.0
    %313 = vmatpush1.msra.mxu0 0.0
    %314 = vmatprep.subr.mxu0 0.0
    %315 = vmatpush1.msra.mxu0 0.0
    %316 = vmatprep.subr.mxu0 0.0
    %317 = vmatpush1.msra.mxu0 0.0
    %318 = vmatprep.subr.mxu0 0.0
    %319 = vmatpush1.msra.mxu0 0.0
    %320 = vmatprep.subr.mxu0 0.0
    %321 = vmatpush1.msra.mxu0 0.0
    %322 = vmatprep.subr.mxu0 0.0
    %323 = vmatpush1.msra.mxu0 0.0
    %324 = vmatprep.subr.mxu0 0.0
    %325 = vmatpush1.msra.mxu0 0.0
    %326 = vmatprep.subr.mxu0 0.0
    %327 = vmatpush1.msra.mxu0 0.0
    %328 = vmatprep.subr.mxu0 0.0
    %329 = vmatpush1.msra.mxu0 0.0
    %330 = vmatprep.subr.mxu0 0.0
    %331 = vmatpush1.msra.mxu0 0.0
    %332 = vmatprep.subr.mxu0 0.0
    %333 = vmatpush1.msra.mxu0 0.0
    %334 = vmatprep.subr.mxu0 0.0
    %335 = vmatpush1.msra.mxu0 0.0
    %336 = vmatprep.subr.mxu0 0.0
    %337 = vmatpush1.msra.mxu0 0.0
    %338 = vmatprep.subr.mxu0 0.0
    %339 = vmatpush1.msra.mxu0 0.0
    %340 = vmatprep.subr.mxu0 0.0
    %341 = vmatpush1.msra.mxu0 0.0
    %342 = vmatprep.mubr.f32.mxu0 0.0
    %343 = vmatmul.mubr.f32.gmra.mrb[0].mxu0 %v276
    %v344 = vpop.f32.mrb[0].mxu0
    %v345 = vadd.f32 0.0, %v344
    %v346 = vpop.f32.mrb[0].mxu0
    %347 = vdwg.mxu0
    %348 = vst [vmem:[#allocation6] sm:$0x3] %v345
    // Predicated region
    $region18: #{attention_forward.1} parent=1 // pred_check
      _
    $region19: #{attention_forward.1} parent=1 // pred_check_branch
      %350 = sbr.rel (0) target = $region21
    $region20: #{attention_forward.1} parent=1 // pred_region
      %s352 = ssub.s32 32, 32
      %353 = vsyncadd [#allocation4], %s352
      %s355 = sshll.u32 [#allocation5], 4
      %s356 = int_to_ptr.vmem [resolvable:$true] %s355
      %358 = dma.vmem_to_hbm [thread:$0]  %s356, 32, %s3, [#allocation4]
    $region21: #{attention_forward.1} parent=1 // pred_fallthru
      _
    // Predicated region
    $region22: #{attention_forward.1} parent=1 // pred_check
      _
    $region23: #{attention_forward.1} parent=1 // pred_check_branch
      %360 = sbr.rel (0) target = $region25
    $region24: #{attention_forward.1} parent=1 // pred_region
      %s362 = ssub.s32 32, 32
      %363 = vsyncadd [#allocation7], %s362
      %s365 = sshll.u32 [#allocation6], 4
      %s366 = int_to_ptr.vmem [resolvable:$true] %s365
      %368 = dma.vmem_to_hbm [thread:$0]  %s366, 32, %s4, [#allocation7]
    $region25: #{attention_forward.1} parent=1 // pred_fallthru
      _
    // Predicated region
    $region26: #{attention_forward.1} parent=1 // pred_check
      _
    $region27: #{attention_forward.1} parent=1 // pred_check_branch
      %370 = sbr.rel (0) target = $region29
    $region28: #{attention_forward.1} parent=1 // pred_region
      %371 = dma.done [#allocation4], 32
    $region29: #{attention_forward.1} parent=1 // pred_fallthru
      _
    // Predicated region
    $region30: #{attention_forward.1} parent=1 // pred_check
      _
    $region31: #{attention_forward.1} parent=1 // pred_check_branch
      %373 = sbr.rel (0) target = $region33
    $region32: #{attention_forward.1} parent=1 // pred_region
      %374 = dma.done [#allocation7], 32
    $region33: #{attention_forward.1} parent=1 // pred_fallthru
      _
    %375 = vsyncpa [#allocation3], 1
    %376 = vsyncpa [#allocation4], 1
    %377 = vsyncpa [#allocation7], 1

</llo_original>
